<compile_context>
chip_gen: v5e
topology: v5e:2x2
jax: 0.10.0
libtpu: 0.0.40
codegen_flags: <defaults>
</compile_context>

<pallas_src>
import functools
import math

import jax
import jax.numpy as jnp
from jax import lax
from jax.experimental import pallas as pl
from jax.experimental.pallas import tpu as pltpu


_MAX_TILE_B = 4096    # rows per grid step (lane-padded VMEM footprint ~9 MiB)
_TILE_GRANULE = 512   # tile granularity when splitting large batches (mult. of 128)


def _choose_tile_b(batch: int, max_tile_b: int) -> int:
    """Pick the batch tile.

    Small batches run as a single tile (splitting them only adds per-step
    overhead). Large batches are split into >=2 tiles (so v7x's second
    TensorCore gets work via the "parallel" grid axis), each a multiple of
    _TILE_GRANULE and capped at max_tile_b.
    """
    if batch <= 2 * _TILE_GRANULE:
        return batch
    tile = pl.cdiv(batch, 2 * _TILE_GRANULE) * _TILE_GRANULE
    return min(max_tile_b, tile)


def _prob_kernel(obs_ref, act_ref, w1o_ref, w1a_ref, b1_ref, w2_ref, b2_ref, out_ref):
    # ---- Layer 1 on the MXU, directly in batch-on-lanes layout --------------
    # h^T (hidden, tile_b) = W1_obs @ obs^T + W1_act @ act^T + b1
    # The operand "transpose" is expressed through dot_general contracting dims
    # (both operands contract their last axis), so no separate activation-tile
    # transpose is materialized and the MXU result is already lane-dense.
    dn = (((1,), (1,)), ((), ()))  # contract lhs dim 1 with rhs dim 1, no batch dims
    h = (
        lax.dot_general(w1o_ref[...], obs_ref[...], dn,
                        preferred_element_type=jnp.float32)
        + lax.dot_general(w1a_ref[...], act_ref[...], dn,
                          preferred_element_type=jnp.float32)
        + b1_ref[...]                                    # (hidden, 1) broadcast over lanes
    )                                                    # (hidden, tile_b) f32
    # LeakyReLU (default negative_slope = 0.01), lane-dense on the VPU.
    h = jnp.where(h > 0, h, 0.01 * h)

    # ---- Layer 2: single output unit -> VPU multiply + sublane reduction ----
    z = jnp.sum(h * w2_ref[...], axis=0, keepdims=True) + b2_ref[0]   # (1, tile_b)

    # ---- Numerically stable, exact sigmoid (exp on the EUP) -----------------
    e = jnp.exp(-jnp.abs(z))
    inv = pl.reciprocal(1.0 + e)                 # exact reciprocal (approx=False)
    p = jnp.where(z >= 0, inv, e * inv)

    out_ref[...] = p.reshape(out_ref.shape).astype(out_ref.dtype)


def prepare_params(params, input_dim):
    """One-time parameter preprocessing (hoisted out of the per-call forward).

    Takes PyTorch-layout Linear params (W: (out, in)) and returns column-split /
    reshaped f32 arrays ready for the kernel. W1 is split so that
    cat([obs, act]) @ W1.T == W1_obs @ obs^T + W1_act @ act^T (exact).
    """
    w1 = params["w1"].astype(jnp.float32)                 # (hidden, input+action)
    return {
        "w1_obs": w1[:, :input_dim],                      # (hidden, input_dim)
        "w1_act": w1[:, input_dim:],                      # (hidden, action_dim)
        "b1": params["b1"].reshape(-1, 1).astype(jnp.float32),   # (hidden, 1)
        "w2": params["w2"].reshape(-1, 1).astype(jnp.float32),   # (hidden, 1)
        "b2": params["b2"].reshape(1).astype(jnp.float32),       # (1,)  -> SMEM scalar
    }


@functools.partial(jax.jit, static_argnames=("max_tile_b",))
def probability_model_forward(observation, action, prepped, *, max_tile_b=_MAX_TILE_B):
    """observation: (B, input_dim) f32, action: (B, action_dim) f32 -> (B, 1) f32."""
    B = observation.shape[0]
    hidden_dim, input_dim = prepped["w1_obs"].shape
    action_dim = prepped["w1_act"].shape[1]

    tile_b = _choose_tile_b(B, max_tile_b)
    num_tiles = pl.cdiv(B, tile_b)
    # NOTE: inputs are passed through untouched (no astype / pad copies). If
    # B % tile_b != 0 the last block is a ragged boundary block; padded rows
    # stay in their own lanes and are sliced away below.

    def batch_spec(feat):  # batch-tiled operand (pipelined / double-buffered)
        return pl.BlockSpec((tile_b, feat), lambda i: (i, 0))

    def resident(r, c):    # weights/bias: same block every step -> stays in VMEM
        return pl.BlockSpec((r, c), lambda i: (0, 0))

    out = pl.pallas_call(
        _prob_kernel,
        # Lane-dense output: one (1, tile_b) row per grid step.
        out_shape=jax.ShapeDtypeStruct((num_tiles, 1, tile_b), jnp.float32),
        grid=(num_tiles,),
        in_specs=[
            batch_spec(input_dim),                                # observation tile
            batch_spec(action_dim),                               # action tile
            resident(hidden_dim, input_dim),                      # W1_obs
            resident(hidden_dim, action_dim),                     # W1_act
            resident(hidden_dim, 1),                              # b1
            resident(hidden_dim, 1),                              # w2 column
            pl.BlockSpec(memory_space=pltpu.MemorySpace.SMEM),    # b2 scalar
        ],
        out_specs=pl.BlockSpec((1, 1, tile_b), lambda i: (i, 0, 0)),
        compiler_params=pltpu.CompilerParams(
            dimension_semantics=("parallel",),        # shard batch tiles across TCs (v7x)
            vmem_limit_bytes=32 * 1024 * 1024,        # headroom for big tiles (v5e default=16 MiB)
        ),
    )(observation, action, prepped["w1_obs"], prepped["w1_act"],
      prepped["b1"], prepped["w2"], prepped["b2"])

    # (num_tiles, 1, tile_b) row-major == batch order; cheap reshape + slice.
    return out.reshape(num_tiles * tile_b, 1)[:B]


def init_params(key, action_dim, input_dim, hidden_dim):
    """Deterministic synthetic parameters, PyTorch Linear shapes/init."""
    k1, k2, k3, k4 = jax.random.split(key, 4)
    in1 = input_dim + action_dim
    lim1 = 1.0 / math.sqrt(in1)
    lim2 = 1.0 / math.sqrt(hidden_dim)
    return {
        "w1": jax.random.uniform(k1, (hidden_dim, in1), jnp.float32, -lim1, lim1),
        "b1": jax.random.uniform(k2, (hidden_dim,), jnp.float32, -lim1, lim1),
        "w2": jax.random.uniform(k3, (1, hidden_dim), jnp.float32, -lim2, lim2),
        "b2": jax.random.uniform(k4, (1,), jnp.float32, -lim2, lim2),
    }


def _reference_forward(observation, action, params):
    """Exact PyTorch semantics in f32 (pure JAX)."""
    x = jnp.concatenate([observation, action], axis=1)
    h = x @ params["w1"].T + params["b1"]
    h = jnp.where(h > 0, h, 0.01 * h)
    z = h @ params["w2"].T + params["b2"]
    return jax.nn.sigmoid(z)


if __name__ == "__main__":
    B, input_dim, action_dim, hidden_dim = 8, 32, 4, 32

    key = jax.random.PRNGKey(0)
    k_obs, k_act, k_par = jax.random.split(key, 3)
    observation = jax.random.normal(k_obs, (B, input_dim), jnp.float32)
    action = jax.random.normal(k_act, (B, action_dim), jnp.float32)
    params = init_params(k_par, action_dim, input_dim, hidden_dim)

    # One-time parameter preprocessing (column split / reshape), hoisted out of
    # the per-call forward path.
    prepped = prepare_params(params, input_dim)

    out = probability_model_forward(observation, action, prepped)
    out = jax.block_until_ready(out)
    assert out.shape == (B, 1), out.shape

    ref = _reference_forward(observation, action, params)
    assert jnp.allclose(out, ref, atol=2e-3, rtol=2e-3), (
        f"mismatch vs f32 reference: max abs err = {jnp.max(jnp.abs(out - ref))}")

    print("KERNEL_OK")
</pallas_src>

<mosaic_0001>
module attributes {stable_mosaic.version = 11 : i64} {
  func.func @_prob_kernel(%arg0: i32, %arg1: memref<8x32xf32, #tpu.memory_space<vmem>>, %arg2: memref<8x4xf32, #tpu.memory_space<vmem>>, %arg3: memref<32x32xf32, #tpu.memory_space<vmem>>, %arg4: memref<32x4xf32, #tpu.memory_space<vmem>>, %arg5: memref<32x1xf32, #tpu.memory_space<vmem>>, %arg6: memref<32x1xf32, #tpu.memory_space<vmem>>, %arg7: memref<1xf32, #tpu.memory_space<smem>>, %arg8: memref<1x1x8xf32, #tpu.memory_space<vmem>>) attributes {dimension_semantics = [#tpu.dimension_semantics<parallel>], iteration_bounds = array<i64: 1>, scalar_prefetch = 0 : i64, scratch_operands = 0 : i64, tpu.core_type = #tpu.core_type<tc>, window_params = [{transform_indices = @transform_0, window_bounds = array<i64: 8, 32>}, {transform_indices = @transform_1, window_bounds = array<i64: 8, 4>}, {pipeline_mode = #tpu.pipeline_mode<synchronous>, transform_indices = @transform_2, window_bounds = array<i64: 32, 32>}, {pipeline_mode = #tpu.pipeline_mode<synchronous>, transform_indices = @transform_3, window_bounds = array<i64: 32, 4>}, {pipeline_mode = #tpu.pipeline_mode<synchronous>, transform_indices = @transform_4, window_bounds = array<i64: 32, 1>}, {pipeline_mode = #tpu.pipeline_mode<synchronous>, transform_indices = @transform_5, window_bounds = array<i64: 32, 1>}, {transform_indices = @transform_6, window_bounds = array<i64: 1>}, {transform_indices = @transform_7, window_bounds = array<i64: 1, 1, 8>}]} {
    %c0 = arith.constant 0 : index
    %c0_0 = arith.constant 0 : index
    %0 = vector.load %arg3[%c0, %c0_0] : memref<32x32xf32, #tpu.memory_space<vmem>>, vector<32x32xf32>
    %c0_1 = arith.constant 0 : index
    %c0_2 = arith.constant 0 : index
    %1 = vector.load %arg1[%c0_1, %c0_2] : memref<8x32xf32, #tpu.memory_space<vmem>>, vector<8x32xf32>
    %cst = arith.constant dense<0.000000e+00> : vector<32x8xf32>
    %2 = tpu.matmul %0, %1, %cst {dimension_numbers = #tpu.dot_dimension_numbers<[1], [1], [0], [0], [0, 0, 1, 0], [], []>} : vector<32x32xf32>, vector<8x32xf32>, vector<32x8xf32> -> vector<32x8xf32>
    %c0_3 = arith.constant 0 : index
    %c0_4 = arith.constant 0 : index
    %3 = vector.load %arg4[%c0_3, %c0_4] : memref<32x4xf32, #tpu.memory_space<vmem>>, vector<32x4xf32>
    %c0_5 = arith.constant 0 : index
    %c0_6 = arith.constant 0 : index
    %4 = vector.load %arg2[%c0_5, %c0_6] : memref<8x4xf32, #tpu.memory_space<vmem>>, vector<8x4xf32>
    %cst_7 = arith.constant dense<0.000000e+00> : vector<32x8xf32>
    %5 = tpu.matmul %3, %4, %cst_7 {dimension_numbers = #tpu.dot_dimension_numbers<[1], [1], [0], [0], [0, 0, 1, 0], [], []>} : vector<32x4xf32>, vector<8x4xf32>, vector<32x8xf32> -> vector<32x8xf32>
    %6 = arith.addf %2, %5 : vector<32x8xf32>
    %c0_8 = arith.constant 0 : index
    %c0_9 = arith.constant 0 : index
    %7 = vector.load %arg5[%c0_8, %c0_9] : memref<32x1xf32, #tpu.memory_space<vmem>>, vector<32x1xf32>
    %8 = vector.broadcast %7 : vector<32x1xf32> to vector<32x8xf32>
    %9 = arith.addf %6, %8 : vector<32x8xf32>
    %cst_10 = arith.constant 0.000000e+00 : f32
    %10 = vector.broadcast %cst_10 : f32 to vector<32x8xf32>
    %11 = arith.cmpf ogt, %9, %10 : vector<32x8xf32>
    %cst_11 = arith.constant 0.00999999977 : f32
    %12 = vector.broadcast %cst_11 : f32 to vector<32x8xf32>
    %13 = arith.mulf %12, %9 : vector<32x8xf32>
    %14 = arith.select %11, %9, %13 : vector<32x8xi1>, vector<32x8xf32>
    %c0_12 = arith.constant 0 : index
    %c0_13 = arith.constant 0 : index
    %15 = vector.load %arg6[%c0_12, %c0_13] : memref<32x1xf32, #tpu.memory_space<vmem>>, vector<32x1xf32>
    %16 = vector.broadcast %15 : vector<32x1xf32> to vector<32x8xf32>
    %17 = arith.mulf %14, %16 : vector<32x8xf32>
    %cst_14 = arith.constant dense<0.000000e+00> : vector<8xf32>
    %18 = vector.multi_reduction <add>, %17, %cst_14 [0] : vector<32x8xf32> to vector<8xf32>
    %19 = vector.shape_cast %18 : vector<8xf32> to vector<1x8xf32>
    %c0_15 = arith.constant 0 : index
    %20 = memref.load %arg7[%c0_15] : memref<1xf32, #tpu.memory_space<smem>>
    %21 = vector.broadcast %20 : f32 to vector<1x8xf32>
    %22 = arith.addf %19, %21 : vector<1x8xf32>
    %23 = math.absf %22 : vector<1x8xf32>
    %cst_16 = arith.constant 0.000000e+00 : f32
    %24 = vector.broadcast %cst_16 : f32 to vector<1x8xf32>
    %25 = arith.subf %24, %23 : vector<1x8xf32>
    %26 = math.exp %25 : vector<1x8xf32>
    %cst_17 = arith.constant 1.000000e+00 : f32
    %27 = vector.broadcast %cst_17 : f32 to vector<1x8xf32>
    %28 = arith.addf %27, %26 : vector<1x8xf32>
    %29 = tpu.reciprocal %28 : vector<1x8xf32> -> vector<1x8xf32>
    %cst_18 = arith.constant 0.000000e+00 : f32
    %30 = vector.broadcast %cst_18 : f32 to vector<1x8xf32>
    %31 = arith.cmpf oge, %22, %30 : vector<1x8xf32>
    %32 = arith.mulf %26, %29 : vector<1x8xf32>
    %33 = arith.select %31, %29, %32 : vector<1x8xi1>, vector<1x8xf32>
    %34 = vector.shape_cast %33 : vector<1x8xf32> to vector<1x1x8xf32>
    %c0_19 = arith.constant 0 : index
    %c0_20 = arith.constant 0 : index
    %c0_21 = arith.constant 0 : index
    %35 = vector.load %arg8[%c0_19, %c0_20, %c0_21] : memref<1x1x8xf32, #tpu.memory_space<vmem>>, vector<1x1x8xf32>
    tpu.vector_store %arg8[%c0_19, %c0_20, %c0_21], %34 {strides = array<i32>} : memref<1x1x8xf32, #tpu.memory_space<vmem>>, vector<1x1x8xf32>,
    return
  }
  func.func @transform_0(%arg0: i32) -> (i32, i32) {
    %c0_i32 = arith.constant 0 : i32
    %c0_i32_0 = arith.constant 0 : i32
    return %arg0, %c0_i32 : i32, i32
  }
  func.func @transform_1(%arg0: i32) -> (i32, i32) {
    %c0_i32 = arith.constant 0 : i32
    %c0_i32_0 = arith.constant 0 : i32
    return %arg0, %c0_i32 : i32, i32
  }
  func.func @transform_2(%arg0: i32) -> (i32, i32) {
    %c0_i32 = arith.constant 0 : i32
    %c0_i32_0 = arith.constant 0 : i32
    %c0_i32_1 = arith.constant 0 : i32
    return %c0_i32, %c0_i32_0 : i32, i32
  }
  func.func @transform_3(%arg0: i32) -> (i32, i32) {
    %c0_i32 = arith.constant 0 : i32
    %c0_i32_0 = arith.constant 0 : i32
    %c0_i32_1 = arith.constant 0 : i32
    return %c0_i32, %c0_i32_0 : i32, i32
  }
  func.func @transform_4(%arg0: i32) -> (i32, i32) {
    %c0_i32 = arith.constant 0 : i32
    %c0_i32_0 = arith.constant 0 : i32
    %c0_i32_1 = arith.constant 0 : i32
    return %c0_i32, %c0_i32_0 : i32, i32
  }
  func.func @transform_5(%arg0: i32) -> (i32, i32) {
    %c0_i32 = arith.constant 0 : i32
    %c0_i32_0 = arith.constant 0 : i32
    %c0_i32_1 = arith.constant 0 : i32
    return %c0_i32, %c0_i32_0 : i32, i32
  }
  func.func @transform_6(%arg0: i32) -> i32 {
    %c0_i32 = arith.constant 0 : i32
    %c0_i32_0 = arith.constant 0 : i32
    return %c0_i32 : i32
  }
  func.func @transform_7(%arg0: i32) -> (i32, i32, i32) {
    %c0_i32 = arith.constant 0 : i32
    %c0_i32_0 = arith.constant 0 : i32
    %c0_i32_1 = arith.constant 0 : i32
    return %arg0, %c0_i32, %c0_i32_0 : i32, i32, i32
  }
}

</mosaic_0001>

<llo_original>
// kernel: probability_model_forward.1
$region0: #{probability_model_forward.1}
  #allocation0 [shape = 'u32[]', space=smem, size = 0x4, offset = 0x4, fixed_abs, tag = 'smem constant byte address 0x4 - core index']
  #allocation1 [shape = 'u32[72,128]{1,0:T(1,128)}', space=vmem, size = 0x9000, scoped, tag = 'internal scratch']
  #allocation2 [shape = 'f32[1]{0:T(128)S(6)}', space=smem, size = 0x200, scoped, tag = 'scoped memory for probability_model_forward.1']
  %s0 = inlined_call_operand.vmem [shape: f32[8,32], index: 0, kind: input, shape index: {}]
  %s1 = inlined_call_operand.vmem [shape: f32[8,4], index: 1, kind: input, shape index: {}]
  %s2 = inlined_call_operand.vmem [shape: f32[32,32], index: 2, kind: input, shape index: {}]
  %s3 = inlined_call_operand.vmem [shape: f32[32,4], index: 3, kind: input, shape index: {}]
  %s4 = inlined_call_operand.vmem [shape: f32[32,1], index: 4, kind: input, shape index: {}]
  %s5 = inlined_call_operand.vmem [shape: f32[32,1], index: 5, kind: input, shape index: {}]
  %s6 = inlined_call_operand.<no memory space> [shape: f32[1], index: 6, kind: input, shape index: {}]
  %s7 = inlined_call_operand.hbm [shape: f32[1,1,8], index: 7, kind: output, shape index: {}]
  %s8 = sld [smem:[#allocation0]]
  $region38: #{probability_model_forward.1} parent=0
    _
  %s10 = ssub.s32 1, %s8
  %s11 = scalar_select 0, %s10, %s8
  %12 = sst [smem:[#allocation2]] %s6
  $region1: #{probability_model_forward.1} parent=0
    #allocation3 [shape = 'u8[512]{0}', space=vmem, size = 0x400, scoped, tag = 'output window, operand 0, single buffered']
    #allocation4 [shape = 's32[1]{0}', space=sflag, size = 0x4, scoped, tag = 'scoped memory for probability_model_forward.1']
    %13 = vsyncpa [#allocation4], 0
    // Predicated region
    $region2: #{probability_model_forward.1} parent=1 // pred_check
      _
    $region3: #{probability_model_forward.1} parent=1 // pred_check_branch
      %15 = sbr.rel (0) target = $region5
    $region4: #{probability_model_forward.1} parent=1 // pred_region
      _
    $region5: #{probability_model_forward.1} parent=1 // pred_fallthru
      _
    // Predicated region
    $region6: #{probability_model_forward.1} parent=1 // pred_check
      _
    $region7: #{probability_model_forward.1} parent=1 // pred_check_branch
      %17 = sbr.rel (0) target = $region9
    $region8: #{probability_model_forward.1} parent=1 // pred_region
      _
    $region9: #{probability_model_forward.1} parent=1 // pred_fallthru
      _
    // Predicated region
    $region10: #{probability_model_forward.1} parent=1 // pred_check
      _
    $region11: #{probability_model_forward.1} parent=1 // pred_check_branch
      %19 = sbr.rel (0) target = $region13
    $region12: #{probability_model_forward.1} parent=1 // pred_region
      _
    $region13: #{probability_model_forward.1} parent=1 // pred_fallthru
      _
    // Predicated region
    $region14: #{probability_model_forward.1} parent=1 // pred_check
      _
    $region15: #{probability_model_forward.1} parent=1 // pred_check_branch
      %21 = sbr.rel (0) target = $region17
    $region16: #{probability_model_forward.1} parent=1 // pred_region
      _
    $region17: #{probability_model_forward.1} parent=1 // pred_fallthru
      _
    // Predicated region
    $region18: #{probability_model_forward.1} parent=1 // pred_check
      _
    $region19: #{probability_model_forward.1} parent=1 // pred_check_branch
      %23 = sbr.rel (0) target = $region21
    $region20: #{probability_model_forward.1} parent=1 // pred_region
      _
    $region21: #{probability_model_forward.1} parent=1 // pred_fallthru
      _
    // Predicated region
    $region22: #{probability_model_forward.1} parent=1 // pred_check
      _
    $region23: #{probability_model_forward.1} parent=1 // pred_check_branch
      %25 = sbr.rel (0) target = $region25
    $region24: #{probability_model_forward.1} parent=1 // pred_region
      _
    $region25: #{probability_model_forward.1} parent=1 // pred_fallthru
      _
    // Predicated region
    $region26: #{probability_model_forward.1} parent=1 // pred_check
      _
    $region27: #{probability_model_forward.1} parent=1 // pred_check_branch
      %27 = sbr.rel (0) target = $region29
    $region28: #{probability_model_forward.1} parent=1 // pred_region
      _
    $region29: #{probability_model_forward.1} parent=1 // pred_fallthru
      _
    %v28 = vld [vmem:[%s2] sm:$0xff]
    %v29 = vld [vmem:[%s2 + $0x8] sm:$0xff]
    %v30 = vld [vmem:[%s2 + $0x10] sm:$0xff]
    %v31 = vld [vmem:[%s2 + $0x18] sm:$0xff]
    %v32 = vld [vmem:[%s0] sm:$0xff]
    %v33 = vld [vmem:[%s3] sm:$0xff]
    %v34 = vld [vmem:[%s3 + $0x8] sm:$0xff]
    %v35 = vld [vmem:[%s3 + $0x10] sm:$0xff]
    %v36 = vld [vmem:[%s3 + $0x18] sm:$0xff]
    %v37 = vld [vmem:[%s1] sm:$0xff]
    %vm38 = vcmask 31744
    %v40 = vsel %vm38, %v33, 0
    %v43 = vsel %vm38, %v34, 0
    %v46 = vsel %vm38, %v35, 0
    %v49 = vsel %vm38, %v36, 0
    %v52 = vsel %vm38, %v37, 0
    %54 = vmatpush.xpose.msra.mxu0 0.0
    %55 = vmatpush.xpose.msra.mxu0 0.0
    %56 = vmatpush.xpose.msra.mxu0 0.0
    %57 = vmatpush.xpose.msra.mxu0 0.0
    %58 = vmatpush.xpose.msra.mxu0 0.0
    %59 = vmatpush.xpose.msra.mxu0 0.0
    %60 = vmatpush.xpose.msra.mxu0 0.0
    %61 = vmatpush.xpose.msra.mxu0 0.0
    %62 = vmatpush.xpose.msra.mxu0 0.0
    %63 = vmatpush.xpose.msra.mxu0 0.0
    %64 = vmatpush.xpose.msra.mxu0 0.0
    %65 = vmatpush.xpose.msra.mxu0 0.0
    %66 = vmatpush.xpose.msra.mxu0 0.0
    %67 = vmatpush.xpose.msra.mxu0 0.0
    %68 = vmatpush.xpose.msra.mxu0 0.0
    %69 = vmatpush.xpose.msra.mxu0 %v52
    %70 = vmatmul.f32.gmra.mxu0 %v40
    %v71 = vpop.f32.mrf.mxu0
    %v72 = vadd.f32 0.0, %v71
    %73 = vmatmul.f32.gmra.mxu0 %v43
    %v74 = vpop.f32.mrf.mxu0
    %v75 = vadd.f32 0.0, %v74
    %76 = vmatmul.f32.gmra.mxu0 %v46
    %v77 = vpop.f32.mrf.mxu0
    %v78 = vadd.f32 0.0, %v77
    %79 = vmatmul.f32.gmra.mxu0 %v49
    %v80 = vpop.f32.mrf.mxu0
    %v81 = vadd.f32 0.0, %v80
    %82 = vdwg.mxu0
    %vm83 = vcmask 261120
    %v85 = vsel %vm83, %v28, 0
    %v88 = vsel %vm83, %v29, 0
    %v91 = vsel %vm83, %v30, 0
    %v94 = vsel %vm83, %v31, 0
    %v97 = vsel %vm83, %v32, 0
    %99 = vmatpush.xpose.msra.mxu0 0.0
    %100 = vmatpush.xpose.msra.mxu0 0.0
    %101 = vmatpush.xpose.msra.mxu0 0.0
    %102 = vmatpush.xpose.msra.mxu0 0.0
    %103 = vmatpush.xpose.msra.mxu0 0.0
    %104 = vmatpush.xpose.msra.mxu0 0.0
    %105 = vmatpush.xpose.msra.mxu0 0.0
    %106 = vmatpush.xpose.msra.mxu0 0.0
    %107 = vmatpush.xpose.msra.mxu0 0.0
    %108 = vmatpush.xpose.msra.mxu0 0.0
    %109 = vmatpush.xpose.msra.mxu0 0.0
    %110 = vmatpush.xpose.msra.mxu0 0.0
    %111 = vmatpush.xpose.msra.mxu0 0.0
    %112 = vmatpush.xpose.msra.mxu0 0.0
    %113 = vmatpush.xpose.msra.mxu0 0.0
    %114 = vmatpush.xpose.msra.mxu0 %v97
    %115 = vmatmul.f32.gmra.mxu0 %v85
    %v116 = vpop.f32.mrf.mxu0
    %v117 = vadd.f32 %v72, %v116
    %118 = vmatmul.f32.gmra.mxu0 %v88
    %v119 = vpop.f32.mrf.mxu0
    %v120 = vadd.f32 %v75, %v119
    %121 = vmatmul.f32.gmra.mxu0 %v91
    %v122 = vpop.f32.mrf.mxu0
    %v123 = vadd.f32 %v78, %v122
    %124 = vmatmul.f32.gmra.mxu0 %v94
    %v125 = vpop.f32.mrf.mxu0
    %v126 = vadd.f32 %v81, %v125
    %127 = vdwg.mxu0
    %v128 = vld [vmem:[%s4] sm:$0xff]
    %v129 = vld [vmem:[%s4 + $0x8] sm:$0xff]
    %v130 = vld [vmem:[%s4 + $0x10] sm:$0xff]
    %v131 = vld [vmem:[%s4 + $0x18] sm:$0xff]
    %133 = vset.pattern.permute.xlu0 0
    %134 = vperm.xlu0 %133, %v128
    %v135 = vpop.permute.xlu0 %134
    %138 = vset.pattern.permute.xlu0 0
    %139 = vperm.xlu0 %138, %v129
    %v140 = vpop.permute.xlu0 %139
    %143 = vset.pattern.permute.xlu0 0
    %144 = vperm.xlu0 %143, %v130
    %v145 = vpop.permute.xlu0 %144
    %148 = vset.pattern.permute.xlu0 0
    %149 = vperm.xlu0 %148, %v131
    %v150 = vpop.permute.xlu0 %149
    %v152 = vadd.f32 %v117, %v135
    %v153 = vadd.f32 %v120, %v140
    %v154 = vadd.f32 %v123, %v145
    %v155 = vadd.f32 %v126, %v150
    %vm156 = vcmp.gt.f32.partialorder %v152, 0.0
    %vm157 = vcmp.gt.f32.partialorder %v153, 0.0
    %vm158 = vcmp.gt.f32.partialorder %v154, 0.0
    %vm159 = vcmp.gt.f32.partialorder %v155, 0.0
    %v160 = vmul.f32 %v152, 0.01
    %v161 = vmul.f32 %v153, 0.01
    %v162 = vmul.f32 %v154, 0.01
    %v163 = vmul.f32 %v155, 0.01
    %v164 = vsel %vm156, %v152, %v160
    %v165 = vsel %vm157, %v153, %v161
    %v166 = vsel %vm158, %v154, %v162
    %v167 = vsel %vm159, %v155, %v163
    %v168 = vld [vmem:[%s5] sm:$0xff]
    %v169 = vld [vmem:[%s5 + $0x8] sm:$0xff]
    %v170 = vld [vmem:[%s5 + $0x10] sm:$0xff]
    %v171 = vld [vmem:[%s5 + $0x18] sm:$0xff]
    %173 = vset.pattern.permute.xlu0 0
    %174 = vperm.xlu0 %173, %v168
    %v175 = vpop.permute.xlu0 %174
    %178 = vset.pattern.permute.xlu0 0
    %179 = vperm.xlu0 %178, %v169
    %v180 = vpop.permute.xlu0 %179
    %183 = vset.pattern.permute.xlu0 0
    %184 = vperm.xlu0 %183, %v170
    %v185 = vpop.permute.xlu0 %184
    %188 = vset.pattern.permute.xlu0 0
    %189 = vperm.xlu0 %188, %v171
    %v190 = vpop.permute.xlu0 %189
    %v192 = vmul.f32 %v164, %v175
    %v193 = vmul.f32 %v165, %v180
    %v194 = vmul.f32 %v166, %v185
    %v195 = vmul.f32 %v167, %v190
    %vm196 = vcmask 64512
    %v197 = vsel %vm196, %v192, 0.0
    %v198 = vsel %vm196, %v193, 0.0
    %v199 = vadd.f32 %v197, %v198
    %v200 = vsel %vm196, %v194, 0.0
    %v201 = vadd.f32 %v199, %v200
    %v202 = vsel %vm196, %v195, 0.0
    %v203 = vadd.f32 %v201, %v202
    %v204 = vrot.slane %v203, 4
    %v205 = vadd.f32 %v203, %v204
    %v206 = vrot.slane %v205, 2
    %v207 = vadd.f32 %v205, %v206
    %v208 = vrot.slane %v207, 1
    %v209 = vadd.f32 %v207, %v208
    %s210 = sld [smem:[#allocation2]]
    %v211 = vstv %s210
    %v212 = vadd.f32 %v209, %v211
    %v213 = vand.u32 2147483647, %v212
    %v214 = vsub.f32 0.0, %v213
    %v215 = vmul.f32 %v214, 1.442695
    %v216 = vpow.pop %v215
    %v217 = vadd.f32 %v216, 1.0
    %v218 = vrcp.pop %v217
    %v219 = vmul.f32 %v217, %v218
    %v220 = vsub.f32 1.0, %v219
    %v221 = vmul.f32 %v218, %v220
    %v222 = vadd.f32 %v218, %v221
    %vm223 = vweird.f32 %v217
    %vm224 = vweird.f32 %v218
    %vm225 = vmor %vm223, %vm224
    %v226 = vsel %vm225, %v218, %v222
    %v227 = vand.u32 2147483647, %v217
    %vm228 = vcmp.eq.f32.partialorder %v227, 8.507059e+37
    %v229 = vand.u32 %v217, 2147483648
    %v230 = vor.u32 1.1754944e-38, %v229
    %v231 = vsel %vm228, %v230, %v226
    %vm232 = vcmp.ge.f32.partialorder %v212, 0.0
    %v233 = vmul.f32 %v216, %v231
    %v234 = vsel %vm232, %v231, %v233
    %vm235 = vcmask 57344
    %236 = vst.msk [vmem:[#allocation3] sm:$0x1] %vm235, %v234
    // Predicated region
    $region30: #{probability_model_forward.1} parent=1 // pred_check
      _
    $region31: #{probability_model_forward.1} parent=1 // pred_check_branch
      %238 = sbr.rel (0) target = $region33
    $region32: #{probability_model_forward.1} parent=1 // pred_region
      %240 = vsyncadd [#allocation4], 0
      %s242 = sshll.u32 [#allocation3], 4
      %s243 = int_to_ptr.vmem [resolvable:$true] %s242
      %s244 = sshll.u32 %s7, 4
      %s245 = int_to_ptr.hbm [resolvable:$true] %s244
      %247 = dma.vmem_to_hbm [thread:$0]  %s243, 16, %s245, [#allocation4]
    $region33: #{probability_model_forward.1} parent=1 // pred_fallthru
      _
    // Predicated region
    $region34: #{probability_model_forward.1} parent=1 // pred_check
      _
    $region35: #{probability_model_forward.1} parent=1 // pred_check_branch
      %249 = sbr.rel (0) target = $region37
    $region36: #{probability_model_forward.1} parent=1 // pred_region
      %251 = dma.done [#allocation4], 16
    $region37: #{probability_model_forward.1} parent=1 // pred_fallthru
      _
    %252 = vsyncpa [#allocation4], 1

</llo_original>
